<compile_context>
chip_gen: v5e
topology: v5e:2x2
jax: 0.10.0
libtpu: 0.0.40
codegen_flags: <defaults>
</compile_context>

<pallas_src>
import functools

import jax
import jax.numpy as jnp
from jax.experimental import pallas as pl
from jax.experimental.pallas import tpu as pltpu


# --------------------------------- kernels ----------------------------------

def _input_proj_kernel(x_ref, w_ref, b_ref, g_ref, beta_ref, h_ref):
    """h = ReLU(LayerNorm(x @ W_in + b_in)); Dropout = identity in eval.

    Note on padded rows: all-zero padded x rows give var=0 -> h_pad = ReLU(ln_b).
    This is harmless: A's padded columns are exactly zero, so padded rows never
    contribute to real outputs, and out[:N] slices them away.
    """
    # TODO(synk): K=16 underfills the MXU lane/depth; pad F to 128 if stage 1
    # ever shows up in the trace (it is a tiny fraction of flops/bytes today).
    h = jnp.dot(x_ref[...], w_ref[...], preferred_element_type=jnp.float32)
    h = h + b_ref[...]
    mu = jnp.mean(h, axis=-1, keepdims=True)
    var = jnp.mean((h - mu) * (h - mu), axis=-1, keepdims=True)
    h = (h - mu) * jax.lax.rsqrt(var + 1e-5) * g_ref[...] + beta_ref[...]
    h_ref[...] = jnp.maximum(h, 0.0).astype(h_ref.dtype)


def _sage_layer_kernel(a_ref, hsrc_ref, hself_ref, rdeg_ref, wl_ref, wr_ref,
                       b_ref, out_ref, acc_ref, *,
                       apply_relu, add_residual, src_resident, tk):
    """One SAGEConv with mean aggregation.

    Aggregation is a 0/1-adjacency matmul accumulated over source-node tiles
    (f32 VMEM accumulator); the finalize multiplies by the per-destination
    reciprocal degree (f32) and applies lin_l / lin_r as two K=H matmuls.
    """
    k = pl.program_id(1)

    @pl.when(k == 0)
    def _():
        acc_ref[...] = jnp.zeros_like(acc_ref)

    if src_resident:
        start = pl.multiple_of(k * tk, 128)
        hsrc = hsrc_ref[pl.ds(start, tk), :]
    else:
        hsrc = hsrc_ref[...]
    acc_ref[...] += jnp.dot(a_ref[...], hsrc, preferred_element_type=jnp.float32)

    @pl.when(k == pl.num_programs(1) - 1)
    def _():
        hself = hself_ref[...]
        # mean aggregation: exact 0/1 counts accumulated in f32, scaled by 1/deg (f32).
        agg = (acc_ref[...] * rdeg_ref[...]).astype(wl_ref.dtype)
        y = jnp.dot(agg, wl_ref[...], preferred_element_type=jnp.float32)
        y = y + jnp.dot(hself, wr_ref[...], preferred_element_type=jnp.float32)
        y = y + b_ref[...]
        if apply_relu:
            y = jnp.maximum(y, 0.0)
        if add_residual:
            y = y + hself.astype(jnp.float32)
        out_ref[...] = y.astype(out_ref.dtype)


# --------------------------------- wrapper ----------------------------------

def _round_up(v, m):
    return (v + m - 1) // m * m


def _tiles(n):
    """Return (n_pad, tm, tk): n_pad multiple of 128 (lane-dense A tiles);
    tm = destination-row tile, tk = source/reduction tile; both divide n_pad."""
    n_pad = _round_up(n, 128)
    if n_pad <= 1024:
        tm, tk = n_pad, n_pad
    elif n_pad <= 8192:
        n_pad = _round_up(n_pad, 1024)
        tm, tk = 512, 1024
    else:
        n_pad = _round_up(n_pad, 2048)
        tm, tk = 1024, 2048
    # v7x has 2 TensorCores: ensure the "parallel" row axis has >= 2 tiles so the
    # grid can be sharded across both cores (an extra ~0.35us step on 1-TC chips).
    if n_pad // tm < 2 and n_pad >= 256:
        tm = n_pad // 2
    return n_pad, tm, tk


def _vmem_limit_bytes():
    """~75% of physical VMEM (48 MiB on v7x, 96 MiB on v5e/v6e), capped."""
    try:
        cap = int(pltpu.get_tpu_info().vmem_capacity_bytes)
    except Exception:
        cap = 64 << 20
    return min(int(cap * 0.75), 100 << 20)


def simple_temporal_model_forward(x, edge_index, params):
    """x: [N, F] float32, edge_index: [2, E] int32. Returns [N, H] float32."""
    N, F = x.shape
    H = params["w_in"].shape[1]
    n_pad, tm, tk = _tiles(N)
    vmem = _vmem_limit_bytes()
    # Keep source features VMEM-resident (single DMA) when they comfortably fit.
    src_resident = (2 * n_pad * H * 2) <= max(vmem // 6, 8 << 20)

    # Glue / preprocessing: exact 0/1 (edge-count) adjacency in bf16 and f32
    # reciprocal degree; mean normalization happens inside the kernel.
    # TODO(synk): for N >> a few thousand switch to a sparse edge-gather
    # aggregation (PrefetchScalarGridSpec, edge list in SMEM); dense A is O(N^2).
    src, dst = edge_index[0], edge_index[1]
    A = jnp.zeros((n_pad, n_pad), jnp.bfloat16).at[dst, src].add(jnp.bfloat16(1.0))
    deg = jnp.zeros((n_pad,), jnp.float32).at[dst].add(1.0)
    rdeg = (1.0 / jnp.maximum(deg, 1.0)).reshape(n_pad, 1)

    x_pad = jnp.pad(x, ((0, n_pad - N), (0, 0))).astype(jnp.bfloat16)

    # bf16 matmul operands (f32 accumulation in-kernel); biases / LN stay f32.
    w_in = params["w_in"].astype(jnp.bfloat16)
    b_in, ln_g, ln_b = params["b_in"], params["ln_g"], params["ln_b"]
    wl1 = params["wl1"].astype(jnp.bfloat16)
    wr1 = params["wr1"].astype(jnp.bfloat16)
    wl2 = params["wl2"].astype(jnp.bfloat16)
    wr2 = params["wr2"].astype(jnp.bfloat16)
    b1, b2 = params["bl1"], params["bl2"]

    # ---- stage 1: input projection (row-tiled, parallel) --------------------
    h = pl.pallas_call(
        _input_proj_kernel,
        out_shape=jax.ShapeDtypeStruct((n_pad, H), jnp.bfloat16),
        grid=(n_pad // tm,),
        in_specs=[
            pl.BlockSpec((tm, F), lambda i: (i, 0)),
            pl.BlockSpec((F, H), lambda i: (0, 0)),     # weights resident
            pl.BlockSpec((1, H), lambda i: (0, 0)),
            pl.BlockSpec((1, H), lambda i: (0, 0)),
            pl.BlockSpec((1, H), lambda i: (0, 0)),
        ],
        out_specs=pl.BlockSpec((tm, H), lambda i: (i, 0)),
        compiler_params=pltpu.CompilerParams(
            dimension_semantics=("parallel",), vmem_limit_bytes=vmem),
    )(x_pad, w_in, b_in, ln_g, ln_b)

    # ---- stage 2/3: SAGEConv layers (row-tiled x reduction-tiled) -----------
    if src_resident:
        hsrc_spec = pl.BlockSpec((n_pad, H), lambda i, k: (0, 0))   # resident
    else:
        hsrc_spec = pl.BlockSpec((tk, H), lambda i, k: (k, 0))      # streamed

    def sage_layer(h_in, wl, wr, bias, *, apply_relu, add_residual, out_dtype):
        kern = functools.partial(_sage_layer_kernel,
                                 apply_relu=apply_relu,
                                 add_residual=add_residual,
                                 src_resident=src_resident,
                                 tk=tk)
        return pl.pallas_call(
            kern,
            out_shape=jax.ShapeDtypeStruct((n_pad, H), out_dtype),
            grid=(n_pad // tm, n_pad // tk),
            in_specs=[
                pl.BlockSpec((tm, tk), lambda i, k: (i, k)),    # A row tile (0/1)
                hsrc_spec,                                      # h (source rows)
                pl.BlockSpec((tm, H), lambda i, k: (i, 0)),     # h (self rows)
                pl.BlockSpec((tm, 1), lambda i, k: (i, 0)),     # 1/deg (f32)
                pl.BlockSpec((H, H), lambda i, k: (0, 0)),      # Wl resident
                pl.BlockSpec((H, H), lambda i, k: (0, 0)),      # Wr resident
                pl.BlockSpec((1, H), lambda i, k: (0, 0)),      # bias resident
            ],
            out_specs=pl.BlockSpec((tm, H), lambda i, k: (i, 0)),
            scratch_shapes=[pltpu.VMEM((tm, H), jnp.float32)],
            compiler_params=pltpu.CompilerParams(
                dimension_semantics=("parallel", "arbitrary"),
                vmem_limit_bytes=vmem),
        )(A, h_in, h_in, rdeg, wl, wr, bias)

    x1 = sage_layer(h, wl1, wr1, b1, apply_relu=True, add_residual=False,
                    out_dtype=jnp.bfloat16)
    out = sage_layer(x1, wl2, wr2, b2, apply_relu=False, add_residual=True,
                     out_dtype=jnp.float32)
    return out[:N]


# ------------------------------ params & reference --------------------------

def init_params(key, node_features, hidden):
    ks = jax.random.split(key, 6)

    def xavier(k, fan_in, fan_out):
        bound = (6.0 / (fan_in + fan_out)) ** 0.5
        return jax.random.uniform(k, (fan_in, fan_out), jnp.float32, -bound, bound)

    H = hidden
    return {
        "w_in": xavier(ks[0], node_features, H),
        "b_in": jnp.zeros((1, H), jnp.float32),
        "ln_g": jnp.ones((1, H), jnp.float32),
        "ln_b": jnp.zeros((1, H), jnp.float32),
        # SAGEConv: lin_l (bias) on aggregated neighbors, lin_r (no bias) on self
        "wl1": xavier(ks[1], H, H),
        "bl1": jnp.zeros((1, H), jnp.float32),
        "wr1": xavier(ks[2], H, H),
        "wl2": xavier(ks[3], H, H),
        "bl2": jnp.zeros((1, H), jnp.float32),
        "wr2": xavier(ks[4], H, H),
    }


def _reference_forward(x, edge_index, params):
    """Pure-JAX f32 reference for correctness checking."""
    N = x.shape[0]
    src, dst = edge_index[0], edge_index[1]
    A = jnp.zeros((N, N), jnp.float32).at[dst, src].add(1.0)
    A = A / jnp.maximum(jnp.sum(A, axis=1, keepdims=True), 1.0)
    h = x @ params["w_in"] + params["b_in"]
    mu = jnp.mean(h, axis=-1, keepdims=True)
    var = jnp.mean((h - mu) ** 2, axis=-1, keepdims=True)
    h = (h - mu) * jax.lax.rsqrt(var + 1e-5) * params["ln_g"] + params["ln_b"]
    h = jnp.maximum(h, 0.0)
    x1 = jnp.maximum(A @ h @ params["wl1"] + params["bl1"] + h @ params["wr1"], 0.0)
    x2 = A @ x1 @ params["wl2"] + params["bl2"] + x1 @ params["wr2"]
    return x2 + x1


if __name__ == "__main__":
    key = jax.random.PRNGKey(0)
    k_x, k_e, k_p = jax.random.split(key, 3)

    num_nodes = 64
    node_features = 16
    hidden_channels = 128          # module default; lane-dense (multiple of 128)
    num_edges = 256

    x = jax.random.normal(k_x, (num_nodes, node_features), jnp.float32)
    edge_index = jax.random.randint(k_e, (2, num_edges), 0, num_nodes, jnp.int32)
    params = init_params(k_p, node_features, hidden_channels)

    out = simple_temporal_model_forward(x, edge_index, params)
    out = jax.block_until_ready(out)

    ref = _reference_forward(x, edge_index, params)
    assert out.shape == (num_nodes, hidden_channels)
    # bf16 matmul inputs (f32 accumulation) -> relaxed tolerance vs f32 reference.
    assert jnp.allclose(out, ref, atol=1e-1, rtol=5e-2), float(
        jnp.max(jnp.abs(out - ref)))

    print("KERNEL_OK")
</pallas_src>

<mosaic_0001>
module attributes {stable_mosaic.version = 11 : i64} {
  func.func @_input_proj_kernel(%arg0: i32, %arg1: memref<128x16xbf16, #tpu.memory_space<vmem>>, %arg2: memref<16x128xbf16, #tpu.memory_space<vmem>>, %arg3: memref<1x128xf32, #tpu.memory_space<vmem>>, %arg4: memref<1x128xf32, #tpu.memory_space<vmem>>, %arg5: memref<1x128xf32, #tpu.memory_space<vmem>>, %arg6: memref<128x128xbf16, #tpu.memory_space<vmem>>) attributes {dimension_semantics = [#tpu.dimension_semantics<parallel>], iteration_bounds = array<i64: 1>, scalar_prefetch = 0 : i64, scratch_operands = 0 : i64, tpu.core_type = #tpu.core_type<tc>, window_params = [{transform_indices = @transform_0, window_bounds = array<i64: 128, 16>}, {pipeline_mode = #tpu.pipeline_mode<synchronous>, transform_indices = @transform_1, window_bounds = array<i64: 16, 128>}, {pipeline_mode = #tpu.pipeline_mode<synchronous>, transform_indices = @transform_2, window_bounds = array<i64: 1, 128>}, {pipeline_mode = #tpu.pipeline_mode<synchronous>, transform_indices = @transform_3, window_bounds = array<i64: 1, 128>}, {pipeline_mode = #tpu.pipeline_mode<synchronous>, transform_indices = @transform_4, window_bounds = array<i64: 1, 128>}, {transform_indices = @transform_5, window_bounds = array<i64: 128, 128>}]} {
    %c0 = arith.constant 0 : index
    %c0_0 = arith.constant 0 : index
    %0 = vector.load %arg1[%c0, %c0_0] : memref<128x16xbf16, #tpu.memory_space<vmem>>, vector<128x16xbf16>
    %c0_1 = arith.constant 0 : index
    %c0_2 = arith.constant 0 : index
    %1 = vector.load %arg2[%c0_1, %c0_2] : memref<16x128xbf16, #tpu.memory_space<vmem>>, vector<16x128xbf16>
    %cst = arith.constant dense<0.000000e+00> : vector<128x128xf32>
    %2 = tpu.matmul %0, %1, %cst {dimension_numbers = #tpu.dot_dimension_numbers<[1], [0], [0], [1], [0, 0, 1, 1], [], []>} : vector<128x16xbf16>, vector<16x128xbf16>, vector<128x128xf32> -> vector<128x128xf32>
    %c0_3 = arith.constant 0 : index
    %c0_4 = arith.constant 0 : index
    %3 = vector.load %arg3[%c0_3, %c0_4] : memref<1x128xf32, #tpu.memory_space<vmem>>, vector<1x128xf32>
    %4 = vector.broadcast %3 : vector<1x128xf32> to vector<128x128xf32>
    %5 = arith.addf %2, %4 : vector<128x128xf32>
    %cst_5 = arith.constant dense<0.000000e+00> : vector<128xf32>
    %6 = vector.multi_reduction <add>, %5, %cst_5 [1] : vector<128x128xf32> to vector<128xf32>
    %7 = vector.shape_cast %6 : vector<128xf32> to vector<128x1xf32>
    %cst_6 = arith.constant 1.280000e+02 : f32
    %8 = vector.broadcast %cst_6 : f32 to vector<128x1xf32>
    %9 = arith.divf %7, %8 : vector<128x1xf32>
    %10 = vector.broadcast %9 : vector<128x1xf32> to vector<128x128xf32>
    %11 = arith.subf %5, %10 : vector<128x128xf32>
    %12 = vector.broadcast %9 : vector<128x1xf32> to vector<128x128xf32>
    %13 = arith.subf %5, %12 : vector<128x128xf32>
    %14 = arith.mulf %11, %13 : vector<128x128xf32>
    %cst_7 = arith.constant dense<0.000000e+00> : vector<128xf32>
    %15 = vector.multi_reduction <add>, %14, %cst_7 [1] : vector<128x128xf32> to vector<128xf32>
    %16 = vector.shape_cast %15 : vector<128xf32> to vector<128x1xf32>
    %cst_8 = arith.constant 1.280000e+02 : f32
    %17 = vector.broadcast %cst_8 : f32 to vector<128x1xf32>
    %18 = arith.divf %16, %17 : vector<128x1xf32>
    %19 = vector.broadcast %9 : vector<128x1xf32> to vector<128x128xf32>
    %20 = arith.subf %5, %19 : vector<128x128xf32>
    %cst_9 = arith.constant 9.99999974E-6 : f32
    %21 = vector.broadcast %cst_9 : f32 to vector<128x1xf32>
    %22 = arith.addf %18, %21 : vector<128x1xf32>
    %23 = math.rsqrt %22 : vector<128x1xf32>
    %24 = vector.broadcast %23 : vector<128x1xf32> to vector<128x128xf32>
    %25 = arith.mulf %20, %24 : vector<128x128xf32>
    %c0_10 = arith.constant 0 : index
    %c0_11 = arith.constant 0 : index
    %26 = vector.load %arg4[%c0_10, %c0_11] : memref<1x128xf32, #tpu.memory_space<vmem>>, vector<1x128xf32>
    %27 = vector.broadcast %26 : vector<1x128xf32> to vector<128x128xf32>
    %28 = arith.mulf %25, %27 : vector<128x128xf32>
    %c0_12 = arith.constant 0 : index
    %c0_13 = arith.constant 0 : index
    %29 = vector.load %arg5[%c0_12, %c0_13] : memref<1x128xf32, #tpu.memory_space<vmem>>, vector<1x128xf32>
    %30 = vector.broadcast %29 : vector<1x128xf32> to vector<128x128xf32>
    %31 = arith.addf %28, %30 : vector<128x128xf32>
    %cst_14 = arith.constant 0.000000e+00 : f32
    %32 = vector.broadcast %cst_14 : f32 to vector<128x128xf32>
    %33 = arith.maximumf %31, %32 : vector<128x128xf32>
    %34 = arith.truncf %33 : vector<128x128xf32> to vector<128x128xbf16>
    %c0_15 = arith.constant 0 : index
    %c0_16 = arith.constant 0 : index
    %35 = vector.load %arg6[%c0_15, %c0_16] : memref<128x128xbf16, #tpu.memory_space<vmem>>, vector<128x128xbf16>
    tpu.vector_store %arg6[%c0_15, %c0_16], %34 {strides = array<i32>} : memref<128x128xbf16, #tpu.memory_space<vmem>>, vector<128x128xbf16>,
    return
  }
  func.func @transform_0(%arg0: i32) -> (i32, i32) {
    %c0_i32 = arith.constant 0 : i32
    %c0_i32_0 = arith.constant 0 : i32
    return %arg0, %c0_i32 : i32, i32
  }
  func.func @transform_1(%arg0: i32) -> (i32, i32) {
    %c0_i32 = arith.constant 0 : i32
    %c0_i32_0 = arith.constant 0 : i32
    %c0_i32_1 = arith.constant 0 : i32
    return %c0_i32, %c0_i32_0 : i32, i32
  }
  func.func @transform_2(%arg0: i32) -> (i32, i32) {
    %c0_i32 = arith.constant 0 : i32
    %c0_i32_0 = arith.constant 0 : i32
    %c0_i32_1 = arith.constant 0 : i32
    return %c0_i32, %c0_i32_0 : i32, i32
  }
  func.func @transform_3(%arg0: i32) -> (i32, i32) {
    %c0_i32 = arith.constant 0 : i32
    %c0_i32_0 = arith.constant 0 : i32
    %c0_i32_1 = arith.constant 0 : i32
    return %c0_i32, %c0_i32_0 : i32, i32
  }
  func.func @transform_4(%arg0: i32) -> (i32, i32) {
    %c0_i32 = arith.constant 0 : i32
    %c0_i32_0 = arith.constant 0 : i32
    %c0_i32_1 = arith.constant 0 : i32
    return %c0_i32, %c0_i32_0 : i32, i32
  }
  func.func @transform_5(%arg0: i32) -> (i32, i32) {
    %c0_i32 = arith.constant 0 : i32
    %c0_i32_0 = arith.constant 0 : i32
    return %arg0, %c0_i32 : i32, i32
  }
}

</mosaic_0001>

<llo_original>
// kernel: tpu_custom_call.1
$region0: #{tpu_custom_call.1}
  #allocation0 [shape = 'u32[]', space=smem, size = 0x4, offset = 0x4, fixed_abs, tag = 'smem constant byte address 0x4 - core index']
  #allocation1 [shape = 'u32[72,128]{1,0:T(1,128)}', space=vmem, size = 0x9000, scoped, tag = 'internal scratch']
  %s0 = inlined_call_operand.vmem [shape: bf16[128,16], index: 0, kind: input, shape index: {}]
  %s1 = inlined_call_operand.vmem [shape: bf16[16,128], index: 1, kind: input, shape index: {}]
  %s2 = inlined_call_operand.vmem [shape: f32[1,128], index: 2, kind: input, shape index: {}]
  %s3 = inlined_call_operand.vmem [shape: f32[1,128], index: 3, kind: input, shape index: {}]
  %s4 = inlined_call_operand.vmem [shape: f32[1,128], index: 4, kind: input, shape index: {}]
  %s5 = inlined_call_operand.hbm [shape: bf16[128,128], index: 5, kind: output, shape index: {}]
  %s6 = sld [smem:[#allocation0]]
  $region30: #{tpu_custom_call.1} parent=0
    _
  %s8 = ssub.s32 1, %s6
  %s9 = scalar_select 0, %s8, %s6
  $region1: #{tpu_custom_call.1} parent=0
    #allocation2 [shape = 'u8[32768]{0}', space=vmem, size = 0x8000, scoped, tag = 'output window, operand 0, single buffered']
    #allocation3 [shape = 's32[1]{0}', space=sflag, size = 0x4, scoped, tag = 'scoped memory for tpu_custom_call.1']
    %10 = vsyncpa [#allocation3], 0
    // Predicated region
    $region2: #{tpu_custom_call.1} parent=1 // pred_check
      _
    $region3: #{tpu_custom_call.1} parent=1 // pred_check_branch
      %12 = sbr.rel (0) target = $region5
    $region4: #{tpu_custom_call.1} parent=1 // pred_region
      _
    $region5: #{tpu_custom_call.1} parent=1 // pred_fallthru
      _
    // Predicated region
    $region6: #{tpu_custom_call.1} parent=1 // pred_check
      _
    $region7: #{tpu_custom_call.1} parent=1 // pred_check_branch
      %14 = sbr.rel (0) target = $region9
    $region8: #{tpu_custom_call.1} parent=1 // pred_region
      _
    $region9: #{tpu_custom_call.1} parent=1 // pred_fallthru
      _
    // Predicated region
    $region10: #{tpu_custom_call.1} parent=1 // pred_check
      _
    $region11: #{tpu_custom_call.1} parent=1 // pred_check_branch
      %16 = sbr.rel (0) target = $region13
    $region12: #{tpu_custom_call.1} parent=1 // pred_region
      _
    $region13: #{tpu_custom_call.1} parent=1 // pred_fallthru
      _
    // Predicated region
    $region14: #{tpu_custom_call.1} parent=1 // pred_check
      _
    $region15: #{tpu_custom_call.1} parent=1 // pred_check_branch
      %18 = sbr.rel (0) target = $region17
    $region16: #{tpu_custom_call.1} parent=1 // pred_region
      _
    $region17: #{tpu_custom_call.1} parent=1 // pred_fallthru
      _
    // Predicated region
    $region18: #{tpu_custom_call.1} parent=1 // pred_check
      _
    $region19: #{tpu_custom_call.1} parent=1 // pred_check_branch
      %20 = sbr.rel (0) target = $region21
    $region20: #{tpu_custom_call.1} parent=1 // pred_region
      _
    $region21: #{tpu_custom_call.1} parent=1 // pred_fallthru
      _
    %v22 = vld [vmem:[%s0] sm:$0xf]
    %v23 = vld [vmem:[%s0 + $0x4] sm:$0xf]
    %v24 = vld [vmem:[%s0 + $0x8] sm:$0xf]
    %v25 = vld [vmem:[%s0 + $0xc] sm:$0xf]
    %v26 = vld [vmem:[%s0 + $0x10] sm:$0xf]
    %v27 = vld [vmem:[%s0 + $0x14] sm:$0xf]
    %v28 = vld [vmem:[%s0 + $0x18] sm:$0xf]
    %v29 = vld [vmem:[%s0 + $0x1c] sm:$0xf]
    %v30 = vld [vmem:[%s0 + $0x20] sm:$0xf]
    %v31 = vld [vmem:[%s0 + $0x24] sm:$0xf]
    %v32 = vld [vmem:[%s0 + $0x28] sm:$0xf]
    %v33 = vld [vmem:[%s0 + $0x2c] sm:$0xf]
    %v34 = vld [vmem:[%s0 + $0x30] sm:$0xf]
    %v35 = vld [vmem:[%s0 + $0x34] sm:$0xf]
    %v36 = vld [vmem:[%s0 + $0x38] sm:$0xf]
    %v37 = vld [vmem:[%s0 + $0x3c] sm:$0xf]
    %v38 = vld [vmem:[%s1] sm:$0xf]
    %v39 = vld [vmem:[%s1 + $0x4] sm:$0xf]
    %v40 = vld [vmem:[%s2] sm:$0x1]
    %v42 = vperm.slane %v40, 0
    %v60 = vunpack.c.l.b16 %v22
    %v61 = vunpack.c.l.b16 %v23
    %v62 = vunpack.c.l.b16 %v24
    %v63 = vunpack.c.l.b16 %v25
    %v64 = vunpack.c.l.b16 %v26
    %v65 = vunpack.c.l.b16 %v27
    %v66 = vunpack.c.l.b16 %v28
    %v67 = vunpack.c.l.b16 %v29
    %v68 = vunpack.c.l.b16 %v30
    %v69 = vunpack.c.l.b16 %v31
    %v70 = vunpack.c.l.b16 %v32
    %v71 = vunpack.c.l.b16 %v33
    %v72 = vunpack.c.l.b16 %v34
    %v73 = vunpack.c.l.b16 %v35
    %v74 = vunpack.c.l.b16 %v36
    %v75 = vunpack.c.l.b16 %v37
    %v76 = vpack.c.b16 %v61, %v60
    %v77 = vpack.c.b16 %v63, %v62
    %v78 = vpack.c.b16 %v65, %v64
    %v79 = vpack.c.b16 %v67, %v66
    %v80 = vpack.c.b16 %v69, %v68
    %v81 = vpack.c.b16 %v71, %v70
    %v82 = vpack.c.b16 %v73, %v72
    %v83 = vpack.c.b16 %v75, %v74
    %v86 = vunpack.c.l.b16 %v38
    %v87 = vunpack.c.l.b16 %v39
    %v88 = vpack.c.b16 %v87, %v86
    %vm90 = vcmask 130048
    %v92 = vsel %vm90, %v76, 0
    %v95 = vsel %vm90, %v77, 0
    %v98 = vsel %vm90, %v78, 0
    %v101 = vsel %vm90, %v79, 0
    %v104 = vsel %vm90, %v80, 0
    %v107 = vsel %vm90, %v81, 0
    %v110 = vsel %vm90, %v82, 0
    %v113 = vsel %vm90, %v83, 0
    %115 = vmatpush.bf16.msra.mxu0 0
    %116 = vmatpush.bf16.msra.mxu0 0
    %117 = vmatpush.bf16.msra.mxu0 0
    %118 = vmatpush.bf16.msra.mxu0 0
    %119 = vmatpush.bf16.msra.mxu0 0
    %120 = vmatpush.bf16.msra.mxu0 0
    %121 = vmatpush.bf16.msra.mxu0 0
    %122 = vmatpush.bf16.msra.mxu0 %v88
    %123 = vmatmul.bf16.gmra.mxu0 %v92
    %v124 = vpop.f32.mrf.mxu0
    %v125 = vadd.f32 %v42, %v124
    %v126 = vpop.f32.mrf.mxu0
    %v127 = vadd.f32 %v42, %v126
    %128 = vmatmul.bf16.gmra.mxu0 %v95
    %v129 = vpop.f32.mrf.mxu0
    %v130 = vadd.f32 %v42, %v129
    %v131 = vpop.f32.mrf.mxu0
    %v132 = vadd.f32 %v42, %v131
    %133 = vmatmul.bf16.gmra.mxu0 %v98
    %v134 = vpop.f32.mrf.mxu0
    %v135 = vadd.f32 %v42, %v134
    %v136 = vpop.f32.mrf.mxu0
    %v137 = vadd.f32 %v42, %v136
    %138 = vmatmul.bf16.gmra.mxu0 %v101
    %v139 = vpop.f32.mrf.mxu0
    %v140 = vadd.f32 %v42, %v139
    %v141 = vpop.f32.mrf.mxu0
    %v142 = vadd.f32 %v42, %v141
    %143 = vmatmul.bf16.gmra.mxu0 %v104
    %v144 = vpop.f32.mrf.mxu0
    %v145 = vadd.f32 %v42, %v144
    %v146 = vpop.f32.mrf.mxu0
    %v147 = vadd.f32 %v42, %v146
    %148 = vmatmul.bf16.gmra.mxu0 %v107
    %v149 = vpop.f32.mrf.mxu0
    %v150 = vadd.f32 %v42, %v149
    %v151 = vpop.f32.mrf.mxu0
    %v152 = vadd.f32 %v42, %v151
    %153 = vmatmul.bf16.gmra.mxu0 %v110
    %v154 = vpop.f32.mrf.mxu0
    %v155 = vadd.f32 %v42, %v154
    %v156 = vpop.f32.mrf.mxu0
    %v157 = vadd.f32 %v42, %v156
    %158 = vmatmul.bf16.gmra.mxu0 %v113
    %v159 = vpop.f32.mrf.mxu0
    %v160 = vadd.f32 %v42, %v159
    %v161 = vpop.f32.mrf.mxu0
    %v162 = vadd.f32 %v42, %v161
    %163 = vdwg.mxu0
    %164 = vadd.xlane.f32.xlu0 %v125
    %v165 = vpop.xlane.xlu0 %164
    %166 = vadd.xlane.f32.xlu0 %v127
    %v167 = vpop.xlane.xlu0 %166
    %168 = vadd.xlane.f32.xlu0 %v130
    %v169 = vpop.xlane.xlu0 %168
    %170 = vadd.xlane.f32.xlu0 %v132
    %v171 = vpop.xlane.xlu0 %170
    %172 = vadd.xlane.f32.xlu0 %v135
    %v173 = vpop.xlane.xlu0 %172
    %174 = vadd.xlane.f32.xlu0 %v137
    %v175 = vpop.xlane.xlu0 %174
    %176 = vadd.xlane.f32.xlu0 %v140
    %v177 = vpop.xlane.xlu0 %176
    %178 = vadd.xlane.f32.xlu0 %v142
    %v179 = vpop.xlane.xlu0 %178
    %180 = vadd.xlane.f32.xlu0 %v145
    %v181 = vpop.xlane.xlu0 %180
    %182 = vadd.xlane.f32.xlu0 %v147
    %v183 = vpop.xlane.xlu0 %182
    %184 = vadd.xlane.f32.xlu0 %v150
    %v185 = vpop.xlane.xlu0 %184
    %186 = vadd.xlane.f32.xlu0 %v152
    %v187 = vpop.xlane.xlu0 %186
    %188 = vadd.xlane.f32.xlu0 %v155
    %v189 = vpop.xlane.xlu0 %188
    %190 = vadd.xlane.f32.xlu0 %v157
    %v191 = vpop.xlane.xlu0 %190
    %192 = vadd.xlane.f32.xlu0 %v160
    %v193 = vpop.xlane.xlu0 %192
    %194 = vadd.xlane.f32.xlu0 %v162
    %v195 = vpop.xlane.xlu0 %194
    %v196 = vrcp.pop 128.0
    %v197 = vmul.f32 128.0, %v196
    %v198 = vsub.f32 1.0, %v197
    %v199 = vmul.f32 %v196, %v198
    %v200 = vadd.f32 %v196, %v199
    %vm201 = vweird.f32 %v196
    %v202 = vsel %vm201, %v196, %v200
    %v203 = vmul.f32 %v165, %v202
    %v204 = vmul.f32 %v167, %v202
    %v205 = vmul.f32 %v169, %v202
    %v206 = vmul.f32 %v171, %v202
    %v207 = vmul.f32 %v173, %v202
    %v208 = vmul.f32 %v175, %v202
    %v209 = vmul.f32 %v177, %v202
    %v210 = vmul.f32 %v179, %v202
    %v211 = vmul.f32 %v181, %v202
    %v212 = vmul.f32 %v183, %v202
    %v213 = vmul.f32 %v185, %v202
    %v214 = vmul.f32 %v187, %v202
    %v215 = vmul.f32 %v189, %v202
    %v216 = vmul.f32 %v191, %v202
    %v217 = vmul.f32 %v193, %v202
    %v218 = vmul.f32 %v195, %v202
    %v219 = vsub.f32 %v125, %v203
    %v220 = vsub.f32 %v127, %v204
    %v221 = vsub.f32 %v130, %v205
    %v222 = vsub.f32 %v132, %v206
    %v223 = vsub.f32 %v135, %v207
    %v224 = vsub.f32 %v137, %v208
    %v225 = vsub.f32 %v140, %v209
    %v226 = vsub.f32 %v142, %v210
    %v227 = vsub.f32 %v145, %v211
    %v228 = vsub.f32 %v147, %v212
    %v229 = vsub.f32 %v150, %v213
    %v230 = vsub.f32 %v152, %v214
    %v231 = vsub.f32 %v155, %v215
    %v232 = vsub.f32 %v157, %v216
    %v233 = vsub.f32 %v160, %v217
    %v234 = vsub.f32 %v162, %v218
    %v235 = vmul.f32 %v219, %v219
    %v236 = vmul.f32 %v220, %v220
    %v237 = vmul.f32 %v221, %v221
    %v238 = vmul.f32 %v222, %v222
    %v239 = vmul.f32 %v223, %v223
    %v240 = vmul.f32 %v224, %v224
    %v241 = vmul.f32 %v225, %v225
    %v242 = vmul.f32 %v226, %v226
    %v243 = vmul.f32 %v227, %v227
    %v244 = vmul.f32 %v228, %v228
    %v245 = vmul.f32 %v229, %v229
    %v246 = vmul.f32 %v230, %v230
    %v247 = vmul.f32 %v231, %v231
    %v248 = vmul.f32 %v232, %v232
    %v249 = vmul.f32 %v233, %v233
    %v250 = vmul.f32 %v234, %v234
    %251 = vadd.xlane.f32.xlu0 %v235
    %v252 = vpop.xlane.xlu0 %251
    %253 = vadd.xlane.f32.xlu0 %v236
    %v254 = vpop.xlane.xlu0 %253
    %255 = vadd.xlane.f32.xlu0 %v237
    %v256 = vpop.xlane.xlu0 %255
    %257 = vadd.xlane.f32.xlu0 %v238
    %v258 = vpop.xlane.xlu0 %257
    %259 = vadd.xlane.f32.xlu0 %v239
    %v260 = vpop.xlane.xlu0 %259
    %261 = vadd.xlane.f32.xlu0 %v240
    %v262 = vpop.xlane.xlu0 %261
    %263 = vadd.xlane.f32.xlu0 %v241
    %v264 = vpop.xlane.xlu0 %263
    %265 = vadd.xlane.f32.xlu0 %v242
    %v266 = vpop.xlane.xlu0 %265
    %267 = vadd.xlane.f32.xlu0 %v243
    %v268 = vpop.xlane.xlu0 %267
    %269 = vadd.xlane.f32.xlu0 %v244
    %v270 = vpop.xlane.xlu0 %269
    %271 = vadd.xlane.f32.xlu0 %v245
    %v272 = vpop.xlane.xlu0 %271
    %273 = vadd.xlane.f32.xlu0 %v246
    %v274 = vpop.xlane.xlu0 %273
    %275 = vadd.xlane.f32.xlu0 %v247
    %v276 = vpop.xlane.xlu0 %275
    %277 = vadd.xlane.f32.xlu0 %v248
    %v278 = vpop.xlane.xlu0 %277
    %279 = vadd.xlane.f32.xlu0 %v249
    %v280 = vpop.xlane.xlu0 %279
    %281 = vadd.xlane.f32.xlu0 %v250
    %v282 = vpop.xlane.xlu0 %281
    %v283 = vmul.f32 %v252, %v202
    %v284 = vmul.f32 %v254, %v202
    %v285 = vmul.f32 %v256, %v202
    %v286 = vmul.f32 %v258, %v202
    %v287 = vmul.f32 %v260, %v202
    %v288 = vmul.f32 %v262, %v202
    %v289 = vmul.f32 %v264, %v202
    %v290 = vmul.f32 %v266, %v202
    %v291 = vmul.f32 %v268, %v202
    %v292 = vmul.f32 %v270, %v202
    %v293 = vmul.f32 %v272, %v202
    %v294 = vmul.f32 %v274, %v202
    %v295 = vmul.f32 %v276, %v202
    %v296 = vmul.f32 %v278, %v202
    %v297 = vmul.f32 %v280, %v202
    %v298 = vmul.f32 %v282, %v202
    %v299 = vadd.f32 %v283, 1e-05
    %v300 = vadd.f32 %v284, 1e-05
    %v301 = vadd.f32 %v285, 1e-05
    %v302 = vadd.f32 %v286, 1e-05
    %v303 = vadd.f32 %v287, 1e-05
    %v304 = vadd.f32 %v288, 1e-05
    %v305 = vadd.f32 %v289, 1e-05
    %v306 = vadd.f32 %v290, 1e-05
    %v307 = vadd.f32 %v291, 1e-05
    %v308 = vadd.f32 %v292, 1e-05
    %v309 = vadd.f32 %v293, 1e-05
    %v310 = vadd.f32 %v294, 1e-05
    %v311 = vadd.f32 %v295, 1e-05
    %v312 = vadd.f32 %v296, 1e-05
    %v313 = vadd.f32 %v297, 1e-05
    %v314 = vadd.f32 %v298, 1e-05
    %v315 = vrsqrt.pop %v299
    %v316 = vmul.f32 %v315, %v299
    %v317 = vmul.f32 %v316, %v315
    %v318 = vmul.f32 0.5, %v317
    %v319 = vsub.f32 1.5, %v318
    %v320 = vmul.f32 %v315, %v319
    %vm321 = vweird.f32 %v299
    %vm322 = vweird.f32 %v315
    %vm323 = vmor %vm321, %vm322
    %v324 = vsel %vm323, %v315, %v320
    %v325 = vrsqrt.pop %v300
    %v326 = vmul.f32 %v325, %v300
    %v327 = vmul.f32 %v326, %v325
    %v328 = vmul.f32 0.5, %v327
    %v329 = vsub.f32 1.5, %v328
    %v330 = vmul.f32 %v325, %v329
    %vm331 = vweird.f32 %v300
    %vm332 = vweird.f32 %v325
    %vm333 = vmor %vm331, %vm332
    %v334 = vsel %vm333, %v325, %v330
    %v335 = vrsqrt.pop %v301
    %v336 = vmul.f32 %v335, %v301
    %v337 = vmul.f32 %v336, %v335
    %v338 = vmul.f32 0.5, %v337
    %v339 = vsub.f32 1.5, %v338
    %v340 = vmul.f32 %v335, %v339
    %vm341 = vweird.f32 %v301
    %vm342 = vweird.f32 %v335
    %vm343 = vmor %vm341, %vm342
    %v344 = vsel %vm343, %v335, %v340
    %v345 = vrsqrt.pop %v302
    %v346 = vmul.f32 %v345, %v302
    %v347 = vmul.f32 %v346, %v345
    %v348 = vmul.f32 0.5, %v347
    %v349 = vsub.f32 1.5, %v348
    %v350 = vmul.f32 %v345, %v349
    %vm351 = vweird.f32 %v302
    %vm352 = vweird.f32 %v345
    %vm353 = vmor %vm351, %vm352
    %v354 = vsel %vm353, %v345, %v350
    %v355 = vrsqrt.pop %v303
    %v356 = vmul.f32 %v355, %v303
    %v357 = vmul.f32 %v356, %v355
    %v358 = vmul.f32 0.5, %v357
    %v359 = vsub.f32 1.5, %v358
    %v360 = vmul.f32 %v355, %v359
    %vm361 = vweird.f32 %v303
    %vm362 = vweird.f32 %v355
    %vm363 = vmor %vm361, %vm362
    %v364 = vsel %vm363, %v355, %v360
    %v365 = vrsqrt.pop %v304
    %v366 = vmul.f32 %v365, %v304
    %v367 = vmul.f32 %v366, %v365
    %v368 = vmul.f32 0.5, %v367
    %v369 = vsub.f32 1.5, %v368
    %v370 = vmul.f32 %v365, %v369
    %vm371 = vweird.f32 %v304
    %vm372 = vweird.f32 %v365
    %vm373 = vmor %vm371, %vm372
    %v374 = vsel %vm373, %v365, %v370
    %v375 = vrsqrt.pop %v305
    %v376 = vmul.f32 %v375, %v305
    %v377 = vmul.f32 %v376, %v375
    %v378 = vmul.f32 0.5, %v377
    %v379 = vsub.f32 1.5, %v378
    %v380 = vmul.f32 %v375, %v379
    %vm381 = vweird.f32 %v305
    %vm382 = vweird.f32 %v375
    %vm383 = vmor %vm381, %vm382
    %v384 = vsel %vm383, %v375, %v380
    %v385 = vrsqrt.pop %v306
    %v386 = vmul.f32 %v385, %v306
    %v387 = vmul.f32 %v386, %v385
    %v388 = vmul.f32 0.5, %v387
    %v389 = vsub.f32 1.5, %v388
    %v390 = vmul.f32 %v385, %v389
    %vm391 = vweird.f32 %v306
    %vm392 = vweird.f32 %v385
    %vm393 = vmor %vm391, %vm392
    %v394 = vsel %vm393, %v385, %v390
    %v395 = vrsqrt.pop %v307
    %v396 = vmul.f32 %v395, %v307
    %v397 = vmul.f32 %v396, %v395
    %v398 = vmul.f32 0.5, %v397
    %v399 = vsub.f32 1.5, %v398
    %v400 = vmul.f32 %v395, %v399
    %vm401 = vweird.f32 %v307
    %vm402 = vweird.f32 %v395
    %vm403 = vmor %vm401, %vm402
    %v404 = vsel %vm403, %v395, %v400
    %v405 = vrsqrt.pop %v308
    %v406 = vmul.f32 %v405, %v308
    %v407 = vmul.f32 %v406, %v405
    %v408 = vmul.f32 0.5, %v407
    %v409 = vsub.f32 1.5, %v408
    %v410 = vmul.f32 %v405, %v409
    %vm411 = vweird.f32 %v308
    %vm412 = vweird.f32 %v405
    %vm413 = vmor %vm411, %vm412
    %v414 = vsel %vm413, %v405, %v410
    %v415 = vrsqrt.pop %v309
    %v416 = vmul.f32 %v415, %v309
    %v417 = vmul.f32 %v416, %v415
    %v418 = vmul.f32 0.5, %v417
    %v419 = vsub.f32 1.5, %v418
    %v420 = vmul.f32 %v415, %v419
    %vm421 = vweird.f32 %v309
    %vm422 = vweird.f32 %v415
    %vm423 = vmor %vm421, %vm422
    %v424 = vsel %vm423, %v415, %v420
    %v425 = vrsqrt.pop %v310
    %v426 = vmul.f32 %v425, %v310
    %v427 = vmul.f32 %v426, %v425
    %v428 = vmul.f32 0.5, %v427
    %v429 = vsub.f32 1.5, %v428
    %v430 = vmul.f32 %v425, %v429
    %vm431 = vweird.f32 %v310
    %vm432 = vweird.f32 %v425
    %vm433 = vmor %vm431, %vm432
    %v434 = vsel %vm433, %v425, %v430
    %v435 = vrsqrt.pop %v311
    %v436 = vmul.f32 %v435, %v311
    %v437 = vmul.f32 %v436, %v435
    %v438 = vmul.f32 0.5, %v437
    %v439 = vsub.f32 1.5, %v438
    %v440 = vmul.f32 %v435, %v439
    %vm441 = vweird.f32 %v311
    %vm442 = vweird.f32 %v435
    %vm443 = vmor %vm441, %vm442
    %v444 = vsel %vm443, %v435, %v440
    %v445 = vrsqrt.pop %v312
    %v446 = vmul.f32 %v445, %v312
    %v447 = vmul.f32 %v446, %v445
    %v448 = vmul.f32 0.5, %v447
    %v449 = vsub.f32 1.5, %v448
    %v450 = vmul.f32 %v445, %v449
    %vm451 = vweird.f32 %v312
    %vm452 = vweird.f32 %v445
    %vm453 = vmor %vm451, %vm452
    %v454 = vsel %vm453, %v445, %v450
    %v455 = vrsqrt.pop %v313
    %v456 = vmul.f32 %v455, %v313
    %v457 = vmul.f32 %v456, %v455
    %v458 = vmul.f32 0.5, %v457
    %v459 = vsub.f32 1.5, %v458
    %v460 = vmul.f32 %v455, %v459
    %vm461 = vweird.f32 %v313
    %vm462 = vweird.f32 %v455
    %vm463 = vmor %vm461, %vm462
    %v464 = vsel %vm463, %v455, %v460
    %v465 = vrsqrt.pop %v314
    %v466 = vmul.f32 %v465, %v314
    %v467 = vmul.f32 %v466, %v465
    %v468 = vmul.f32 0.5, %v467
    %v469 = vsub.f32 1.5, %v468
    %v470 = vmul.f32 %v465, %v469
    %vm471 = vweird.f32 %v314
    %vm472 = vweird.f32 %v465
    %vm473 = vmor %vm471, %vm472
    %v474 = vsel %vm473, %v465, %v470
    %v475 = vmul.f32 %v219, %v324
    %v476 = vmul.f32 %v220, %v334
    %v477 = vmul.f32 %v221, %v344
    %v478 = vmul.f32 %v222, %v354
    %v479 = vmul.f32 %v223, %v364
    %v480 = vmul.f32 %v224, %v374
    %v481 = vmul.f32 %v225, %v384
    %v482 = vmul.f32 %v226, %v394
    %v483 = vmul.f32 %v227, %v404
    %v484 = vmul.f32 %v228, %v414
    %v485 = vmul.f32 %v229, %v424
    %v486 = vmul.f32 %v230, %v434
    %v487 = vmul.f32 %v231, %v444
    %v488 = vmul.f32 %v232, %v454
    %v489 = vmul.f32 %v233, %v464
    %v490 = vmul.f32 %v234, %v474
    %v491 = vld [vmem:[%s3] sm:$0x1]
    %v493 = vperm.slane %v491, 0
    %v495 = vmul.f32 %v475, %v493
    %v496 = vmul.f32 %v476, %v493
    %v497 = vmul.f32 %v477, %v493
    %v498 = vmul.f32 %v478, %v493
    %v499 = vmul.f32 %v479, %v493
    %v500 = vmul.f32 %v480, %v493
    %v501 = vmul.f32 %v481, %v493
    %v502 = vmul.f32 %v482, %v493
    %v503 = vmul.f32 %v483, %v493
    %v504 = vmul.f32 %v484, %v493
    %v505 = vmul.f32 %v485, %v493
    %v506 = vmul.f32 %v486, %v493
    %v507 = vmul.f32 %v487, %v493
    %v508 = vmul.f32 %v488, %v493
    %v509 = vmul.f32 %v489, %v493
    %v510 = vmul.f32 %v490, %v493
    %v511 = vld [vmem:[%s4] sm:$0x1]
    %v513 = vperm.slane %v511, 0
    %v515 = vadd.f32 %v495, %v513
    %v516 = vadd.f32 %v496, %v513
    %v517 = vadd.f32 %v497, %v513
    %v518 = vadd.f32 %v498, %v513
    %v519 = vadd.f32 %v499, %v513
    %v520 = vadd.f32 %v500, %v513
    %v521 = vadd.f32 %v501, %v513
    %v522 = vadd.f32 %v502, %v513
    %v523 = vadd.f32 %v503, %v513
    %v524 = vadd.f32 %v504, %v513
    %v525 = vadd.f32 %v505, %v513
    %v526 = vadd.f32 %v506, %v513
    %v527 = vadd.f32 %v507, %v513
    %v528 = vadd.f32 %v508, %v513
    %v529 = vadd.f32 %v509, %v513
    %v530 = vadd.f32 %v510, %v513
    %v531 = vmax.f32 %v515, 0.0
    %v532 = vmax.f32 %v516, 0.0
    %v533 = vmax.f32 %v517, 0.0
    %v534 = vmax.f32 %v518, 0.0
    %v535 = vmax.f32 %v519, 0.0
    %v536 = vmax.f32 %v520, 0.0
    %v537 = vmax.f32 %v521, 0.0
    %v538 = vmax.f32 %v522, 0.0
    %v539 = vmax.f32 %v523, 0.0
    %v540 = vmax.f32 %v524, 0.0
    %v541 = vmax.f32 %v525, 0.0
    %v542 = vmax.f32 %v526, 0.0
    %v543 = vmax.f32 %v527, 0.0
    %v544 = vmax.f32 %v528, 0.0
    %v545 = vmax.f32 %v529, 0.0
    %v546 = vmax.f32 %v530, 0.0
    %v547 = vpack.c.bf16 %v531, %v531
    %v548 = vpack.c.bf16 %v532, %v532
    %v549 = vpack.c.bf16 %v533, %v533
    %v550 = vpack.c.bf16 %v534, %v534
    %v551 = vpack.c.bf16 %v535, %v535
    %v552 = vpack.c.bf16 %v536, %v536
    %v553 = vpack.c.bf16 %v537, %v537
    %v554 = vpack.c.bf16 %v538, %v538
    %v555 = vpack.c.bf16 %v539, %v539
    %v556 = vpack.c.bf16 %v540, %v540
    %v557 = vpack.c.bf16 %v541, %v541
    %v558 = vpack.c.bf16 %v542, %v542
    %v559 = vpack.c.bf16 %v543, %v543
    %v560 = vpack.c.bf16 %v544, %v544
    %v561 = vpack.c.bf16 %v545, %v545
    %v562 = vpack.c.bf16 %v546, %v546
    %563 = vst [vmem:[#allocation2] sm:$0xf] %v547
    %564 = vst [vmem:[#allocation2 + $0x4] sm:$0xf] %v548
    %565 = vst [vmem:[#allocation2 + $0x8] sm:$0xf] %v549
    %566 = vst [vmem:[#allocation2 + $0xc] sm:$0xf] %v550
    %567 = vst [vmem:[#allocation2 + $0x10] sm:$0xf] %v551
    %568 = vst [vmem:[#allocation2 + $0x14] sm:$0xf] %v552
    %569 = vst [vmem:[#allocation2 + $0x18] sm:$0xf] %v553
    %570 = vst [vmem:[#allocation2 + $0x1c] sm:$0xf] %v554
    %571 = vst [vmem:[#allocation2 + $0x20] sm:$0xf] %v555
    %572 = vst [vmem:[#allocation2 + $0x24] sm:$0xf] %v556
    %573 = vst [vmem:[#allocation2 + $0x28] sm:$0xf] %v557
    %574 = vst [vmem:[#allocation2 + $0x2c] sm:$0xf] %v558
    %575 = vst [vmem:[#allocation2 + $0x30] sm:$0xf] %v559
    %576 = vst [vmem:[#allocation2 + $0x34] sm:$0xf] %v560
    %577 = vst [vmem:[#allocation2 + $0x38] sm:$0xf] %v561
    %578 = vst [vmem:[#allocation2 + $0x3c] sm:$0xf] %v562
    // Predicated region
    $region22: #{tpu_custom_call.1} parent=1 // pred_check
      _
    $region23: #{tpu_custom_call.1} parent=1 // pred_check_branch
      %580 = sbr.rel (0) target = $region25
    $region24: #{tpu_custom_call.1} parent=1 // pred_region
      %582 = vsyncadd [#allocation3], 0
      %s583 = sshll.u32 [#allocation2], 4
      %s584 = int_to_ptr.vmem [resolvable:$true] %s583
      %s585 = sshll.u32 %s5, 4
      %s586 = int_to_ptr.hbm [resolvable:$true] %s585
      %591 = dma.vmem_to_hbm [thread:$0]  %s584, 1024, %s586, [#allocation3], 64, 64, 4
    $region25: #{tpu_custom_call.1} parent=1 // pred_fallthru
      _
    // Predicated region
    $region26: #{tpu_custom_call.1} parent=1 // pred_check
      _
    $region27: #{tpu_custom_call.1} parent=1 // pred_check_branch
      %593 = sbr.rel (0) target = $region29
    $region28: #{tpu_custom_call.1} parent=1 // pred_region
      %595 = dma.done [#allocation3], 1024
    $region29: #{tpu_custom_call.1} parent=1 // pred_fallthru
      _
    %596 = vsyncpa [#allocation3], 1

</llo_original>
